<compile_context>
chip_gen: v6e
topology: v6e:2x2x1
jax: 0.10.0
libtpu: 0.0.40
codegen_flags: <defaults>
</compile_context>

<pallas_src>
import functools

import jax
import jax.numpy as jnp
from jax.experimental import pallas as pl
from jax.experimental.pallas import tpu as pltpu


def _round_up(x, m):
    return (x + m - 1) // m * m


def _use_bf16_elementwise():
    """bf16 elementwise only on chips with a native bf16 VPU (v6e / v7x)."""
    try:
        kind = jax.devices()[0].device_kind.lower()
    except Exception:
        return False
    return any(tag in kind for tag in ("v6", "v7", "7x"))


def _ebm_kernel(xT_ref, w1t_ref, b1_ref, w2t_ref, b2_ref, nw3t_ref, shift_ref,
                o_ref, *, act_dtype):
    dim = xT_ref.shape[0]
    x = xT_ref[...]                          # (dim, tb) f32, batch on lanes
    w1t = w1t_ref[...]                       # (H, dim)  f32

    # ---- layer 1: acc = W1^T x (f32 accumulate) ------------------------------
    if dim <= 8:
        # Tiny input dim: VPU broadcast multiply-adds; keeps the MXU free for
        # the 128x128 layer and avoids a sublane-padded K=dim MXU pass.
        acc = w1t[:, 0:1] * x[0:1, :]
        for d in range(1, dim):
            acc = acc + w1t[:, d:d + 1] * x[d:d + 1, :]
    else:
        acc = jnp.dot(w1t.astype(jnp.bfloat16), x.astype(jnp.bfloat16),
                      preferred_element_type=jnp.float32)

    def leaky(v):
        # max(v, 0.2*v): 2 VALU ops per element (vs 3 for where/select).
        return jnp.maximum(v, v * 0.2)

    # ---- bias + LeakyReLU (act_dtype = bf16 on v6e/v7x, f32 on v5e) ----------
    h1 = leaky(acc.astype(act_dtype) + b1_ref[...])           # (H, tb)

    # ---- layer 2: 128x128 MXU matmul, bf16 operands, f32 accumulate ----------
    h2 = jnp.dot(w2t_ref[...], h1.astype(jnp.bfloat16),
                 preferred_element_type=jnp.float32)
    h2 = leaky(h2.astype(act_dtype) + b2_ref[...])

    # ---- layer 3 + output: (1,H)@(H,tb); -w3 and -(b3+c) pre-folded ----------
    # (Keep in bf16; if downstream use needs tighter precision this 1x128
    #  matmul can be switched to f32 at negligible cost.)
    o_ref[...] = (jnp.dot(nw3t_ref[...], h2.astype(jnp.bfloat16),
                          preferred_element_type=jnp.float32)
                  + shift_ref[0, 0])          # (1, tb) f32, lane-dense store


@functools.partial(jax.jit, static_argnames=("tb",))
def ebm_forward(x, params, *, tb=4096):
    """x: (B, dim) float32.  Returns log_p: (B, 1) float32."""
    w1, b1, w2, b2, w3, b3, c = params
    B, dim = x.shape
    H = w1.shape[1]

    # --- batch tiling ----------------------------------------------------------
    # Big lane-dense tiles: the kernel is grid-step-overhead bound, not
    # MXU/HBM bound, so fewer/larger steps win.  Cap at 8192 (fits in the
    # raised 64 MiB scoped-VMEM limit on every generation).
    tb = _round_up(min(max(tb, 128), 8192), 128)
    B_ceil = _round_up(B, 128)
    tb = min(tb, B_ceil)                      # don't over-pad small batches
    if B_ceil >= 256:
        # Keep at least 2 grid steps so v7x's two TensorCores both get work
        # (harmless on single-core v5e/v6e).
        tb = min(tb, _round_up((B_ceil + 1) // 2, 128))
    B_pad = _round_up(B, tb)
    n_tiles = B_pad // tb

    bf16_elems = _use_bf16_elementwise()
    act_dtype = jnp.bfloat16 if bf16_elems else jnp.float32

    # One-time layout / dtype plumbing.  Operand 0 is marked fusible so XLA may
    # fold the pad/transpose into the pallas_call input DMA instead of running
    # a separate HBM pass.
    if B_pad != B:
        # Zero padding: padded lanes compute bias-only garbage, sliced off
        # below.  Safe because nothing in the kernel reduces across lanes.
        x = jnp.pad(x, ((0, B_pad - B), (0, 0)))
    xT = x.T.astype(jnp.float32)                      # (dim, B_pad), batch on lanes
    w1t = w1.T.astype(jnp.float32)                    # (H, dim)  - VPU layer stays f32
    b1c = b1.reshape(H, 1).astype(act_dtype)          # (H, 1)
    w2t = w2.T.astype(jnp.bfloat16)                   # (H, H)    - MXU operand
    b2c = b2.reshape(H, 1).astype(act_dtype)          # (H, 1)
    nw3t = (-w3).T.astype(jnp.bfloat16)               # (1, H)    - negation folded in
    shift = (-(b3 + c)).reshape(1, 1).astype(jnp.float32)   # -(b3 + c) scalar

    kernel = functools.partial(_ebm_kernel, act_dtype=act_dtype)

    # Weight/bias specs use constant index maps -> Pallas keeps them resident in
    # VMEM across grid steps (only the x tile and output row move per step).
    out = pl.pallas_call(
        kernel,
        out_shape=jax.ShapeDtypeStruct((1, B_pad), jnp.float32),
        grid_spec=pltpu.PrefetchScalarGridSpec(
            num_scalar_prefetch=0,
            grid=(n_tiles,),
            in_specs=[
                pl.BlockSpec((dim, tb), lambda i: (0, i)),          # x tile
                pl.BlockSpec((H, dim), lambda i: (0, 0)),           # W1^T (resident)
                pl.BlockSpec((H, 1), lambda i: (0, 0)),             # b1
                pl.BlockSpec((H, H), lambda i: (0, 0)),             # W2^T
                pl.BlockSpec((H, 1), lambda i: (0, 0)),             # b2
                pl.BlockSpec((1, H), lambda i: (0, 0)),             # -W3^T
                pl.BlockSpec(memory_space=pltpu.MemorySpace.SMEM),  # -(b3+c) scalar
            ],
            out_specs=pl.BlockSpec((1, tb), lambda i: (0, i)),      # lane-dense row
        ),
        compiler_params=pltpu.CompilerParams(
            dimension_semantics=("parallel",),
            vmem_limit_bytes=64 * 1024 * 1024,
            allow_input_fusion=[True, False, False, False, False, False, False],
        ),
    )(xT, w1t, b1c, w2t, b2c, nw3t, shift)

    return out[0, :B].reshape(B, 1)


def init_params(key, dim=2, hidden=128):
    """Deterministic synthetic params (shapes match the PyTorch module)."""
    k1, k2, k3, k4, k5, k6 = jax.random.split(key, 6)
    w1 = jax.random.normal(k1, (dim, hidden), jnp.float32) * 0.1
    b1 = jax.random.normal(k2, (1, hidden), jnp.float32) * 0.1
    w2 = jax.random.normal(k3, (hidden, hidden), jnp.float32) * 0.1
    b2 = jax.random.normal(k4, (1, hidden), jnp.float32) * 0.1
    w3 = jax.random.normal(k5, (hidden, 1), jnp.float32) * 0.1
    b3 = jax.random.normal(k6, (1, 1), jnp.float32) * 0.1
    c = jnp.ones((1, 1), jnp.float32)  # nn.Parameter(torch.tensor([1.0]))
    return (w1, b1, w2, b2, w3, b3, c)


def ebm_reference(x, params):
    """Plain-JAX f32 reference of the same forward pass (for sanity check)."""
    w1, b1, w2, b2, w3, b3, c = params

    def lrelu(v):
        return jnp.where(v > 0, v, 0.2 * v)

    h = lrelu(x @ w1 + b1)
    h = lrelu(h @ w2 + b2)
    f = h @ w3 + b3
    return -f - c[0, 0]


if __name__ == "__main__":
    key = jax.random.PRNGKey(0)
    kx, kp = jax.random.split(key)

    # Ragged small batch: pads to 256 and runs 2 grid steps at tb=128,
    # exercising padding, the multi-step grid (v7x: one tile per TensorCore),
    # and the lane-dense output path.
    B, dim = 200, 2
    x = jax.random.normal(kx, (B, dim), jnp.float32)
    params = init_params(kp, dim=dim, hidden=128)

    log_p = ebm_forward(x, params)
    log_p = jax.block_until_ready(log_p)

    ref = ebm_reference(x, params)
    assert log_p.shape == (B, 1)
    # bf16 MXU operands (and bf16 elementwise on v6e/v7x) with f32 accumulation
    # -> small, deliberate precision loss vs the f32 reference.
    assert jnp.allclose(log_p, ref, atol=2e-2, rtol=2e-2), (
        float(jnp.max(jnp.abs(log_p - ref))))

    print("KERNEL_OK")
</pallas_src>

<mosaic_0001>
module attributes {stable_mosaic.version = 11 : i64} {
  func.func @_ebm_kernel(%arg0: i32, %arg1: memref<2x128xf32, #tpu.memory_space<vmem>>, %arg2: memref<128x2xf32, #tpu.memory_space<vmem>>, %arg3: memref<128x1xf32, #tpu.memory_space<vmem>>, %arg4: memref<128x128xbf16, #tpu.memory_space<vmem>>, %arg5: memref<128x1xf32, #tpu.memory_space<vmem>>, %arg6: memref<1x128xbf16, #tpu.memory_space<vmem>>, %arg7: memref<1x1xf32, #tpu.memory_space<smem>>, %arg8: memref<1x128xf32, #tpu.memory_space<vmem>>) attributes {dimension_semantics = [#tpu.dimension_semantics<parallel>], iteration_bounds = array<i64: 2>, scalar_prefetch = 0 : i64, scratch_operands = 0 : i64, tpu.core_type = #tpu.core_type<tc>, window_params = [{transform_indices = @transform_0, window_bounds = array<i64: 2, 128>}, {pipeline_mode = #tpu.pipeline_mode<synchronous>, transform_indices = @transform_1, window_bounds = array<i64: 128, 2>}, {pipeline_mode = #tpu.pipeline_mode<synchronous>, transform_indices = @transform_2, window_bounds = array<i64: 128, 1>}, {pipeline_mode = #tpu.pipeline_mode<synchronous>, transform_indices = @transform_3, window_bounds = array<i64: 128, 128>}, {pipeline_mode = #tpu.pipeline_mode<synchronous>, transform_indices = @transform_4, window_bounds = array<i64: 128, 1>}, {pipeline_mode = #tpu.pipeline_mode<synchronous>, transform_indices = @transform_5, window_bounds = array<i64: 1, 128>}, {transform_indices = @transform_6, window_bounds = array<i64: 1, 1>}, {transform_indices = @transform_7, window_bounds = array<i64: 1, 128>}]} {
    %c0 = arith.constant 0 : index
    %c0_0 = arith.constant 0 : index
    %0 = vector.load %arg1[%c0, %c0_0] : memref<2x128xf32, #tpu.memory_space<vmem>>, vector<2x128xf32>
    %c0_1 = arith.constant 0 : index
    %c0_2 = arith.constant 0 : index
    %1 = vector.load %arg2[%c0_1, %c0_2] : memref<128x2xf32, #tpu.memory_space<vmem>>, vector<128x2xf32>
    %2 = vector.extract_strided_slice %1 {offsets = [0, 0], sizes = [128, 1], strides = [1, 1]} : vector<128x2xf32> to vector<128x1xf32>
    %3 = vector.extract_strided_slice %0 {offsets = [0, 0], sizes = [1, 128], strides = [1, 1]} : vector<2x128xf32> to vector<1x128xf32>
    %4 = vector.broadcast %2 : vector<128x1xf32> to vector<128x128xf32>
    %5 = vector.broadcast %3 : vector<1x128xf32> to vector<128x128xf32>
    %6 = arith.mulf %4, %5 : vector<128x128xf32>
    %7 = vector.extract_strided_slice %1 {offsets = [0, 1], sizes = [128, 1], strides = [1, 1]} : vector<128x2xf32> to vector<128x1xf32>
    %8 = vector.extract_strided_slice %0 {offsets = [1, 0], sizes = [1, 128], strides = [1, 1]} : vector<2x128xf32> to vector<1x128xf32>
    %9 = vector.broadcast %7 : vector<128x1xf32> to vector<128x128xf32>
    %10 = vector.broadcast %8 : vector<1x128xf32> to vector<128x128xf32>
    %11 = arith.mulf %9, %10 : vector<128x128xf32>
    %12 = arith.addf %6, %11 : vector<128x128xf32>
    %c0_3 = arith.constant 0 : index
    %c0_4 = arith.constant 0 : index
    %13 = vector.load %arg3[%c0_3, %c0_4] : memref<128x1xf32, #tpu.memory_space<vmem>>, vector<128x1xf32>
    %14 = vector.broadcast %13 : vector<128x1xf32> to vector<128x128xf32>
    %15 = arith.addf %12, %14 : vector<128x128xf32>
    %cst = arith.constant 2.000000e-01 : f32
    %16 = vector.broadcast %cst : f32 to vector<128x128xf32>
    %17 = arith.mulf %15, %16 : vector<128x128xf32>
    %18 = arith.maximumf %15, %17 : vector<128x128xf32>
    %c0_5 = arith.constant 0 : index
    %c0_6 = arith.constant 0 : index
    %19 = vector.load %arg4[%c0_5, %c0_6] : memref<128x128xbf16, #tpu.memory_space<vmem>>, vector<128x128xbf16>
    %20 = arith.truncf %18 : vector<128x128xf32> to vector<128x128xbf16>
    %cst_7 = arith.constant dense<0.000000e+00> : vector<128x128xf32>
    %21 = tpu.matmul %19, %20, %cst_7 {dimension_numbers = #tpu.dot_dimension_numbers<[1], [0], [0], [1], [0, 0, 1, 1], [], []>} : vector<128x128xbf16>, vector<128x128xbf16>, vector<128x128xf32> -> vector<128x128xf32>
    %c0_8 = arith.constant 0 : index
    %c0_9 = arith.constant 0 : index
    %22 = vector.load %arg5[%c0_8, %c0_9] : memref<128x1xf32, #tpu.memory_space<vmem>>, vector<128x1xf32>
    %23 = vector.broadcast %22 : vector<128x1xf32> to vector<128x128xf32>
    %24 = arith.addf %21, %23 : vector<128x128xf32>
    %cst_10 = arith.constant 2.000000e-01 : f32
    %25 = vector.broadcast %cst_10 : f32 to vector<128x128xf32>
    %26 = arith.mulf %24, %25 : vector<128x128xf32>
    %27 = arith.maximumf %24, %26 : vector<128x128xf32>
    %c0_11 = arith.constant 0 : index
    %c0_12 = arith.constant 0 : index
    %28 = vector.load %arg6[%c0_11, %c0_12] : memref<1x128xbf16, #tpu.memory_space<vmem>>, vector<1x128xbf16>
    %29 = arith.truncf %27 : vector<128x128xf32> to vector<128x128xbf16>
    %cst_13 = arith.constant dense<0.000000e+00> : vector<1x128xf32>
    %30 = tpu.matmul %28, %29, %cst_13 {dimension_numbers = #tpu.dot_dimension_numbers<[1], [0], [0], [1], [0, 0, 1, 1], [], []>} : vector<1x128xbf16>, vector<128x128xbf16>, vector<1x128xf32> -> vector<1x128xf32>
    %c0_14 = arith.constant 0 : index
    %c0_15 = arith.constant 0 : index
    %31 = memref.load %arg7[%c0_14, %c0_15] : memref<1x1xf32, #tpu.memory_space<smem>>
    %32 = vector.broadcast %31 : f32 to vector<1x128xf32>
    %33 = arith.addf %30, %32 : vector<1x128xf32>
    %c0_16 = arith.constant 0 : index
    %c0_17 = arith.constant 0 : index
    %34 = vector.load %arg8[%c0_16, %c0_17] : memref<1x128xf32, #tpu.memory_space<vmem>>, vector<1x128xf32>
    tpu.vector_store %arg8[%c0_16, %c0_17], %33 {strides = array<i32>} : memref<1x128xf32, #tpu.memory_space<vmem>>, vector<1x128xf32>,
    return
  }
  func.func @transform_0(%arg0: i32) -> (i32, i32) {
    %c0_i32 = arith.constant 0 : i32
    %c0_i32_0 = arith.constant 0 : i32
    return %c0_i32, %arg0 : i32, i32
  }
  func.func @transform_1(%arg0: i32) -> (i32, i32) {
    %c0_i32 = arith.constant 0 : i32
    %c0_i32_0 = arith.constant 0 : i32
    %c0_i32_1 = arith.constant 0 : i32
    return %c0_i32, %c0_i32_0 : i32, i32
  }
  func.func @transform_2(%arg0: i32) -> (i32, i32) {
    %c0_i32 = arith.constant 0 : i32
    %c0_i32_0 = arith.constant 0 : i32
    %c0_i32_1 = arith.constant 0 : i32
    return %c0_i32, %c0_i32_0 : i32, i32
  }
  func.func @transform_3(%arg0: i32) -> (i32, i32) {
    %c0_i32 = arith.constant 0 : i32
    %c0_i32_0 = arith.constant 0 : i32
    %c0_i32_1 = arith.constant 0 : i32
    return %c0_i32, %c0_i32_0 : i32, i32
  }
  func.func @transform_4(%arg0: i32) -> (i32, i32) {
    %c0_i32 = arith.constant 0 : i32
    %c0_i32_0 = arith.constant 0 : i32
    %c0_i32_1 = arith.constant 0 : i32
    return %c0_i32, %c0_i32_0 : i32, i32
  }
  func.func @transform_5(%arg0: i32) -> (i32, i32) {
    %c0_i32 = arith.constant 0 : i32
    %c0_i32_0 = arith.constant 0 : i32
    %c0_i32_1 = arith.constant 0 : i32
    return %c0_i32, %c0_i32_0 : i32, i32
  }
  func.func @transform_6(%arg0: i32) -> (i32, i32) {
    %c0_i32 = arith.constant 0 : i32
    %c0_i32_0 = arith.constant 0 : i32
    %c0_i32_1 = arith.constant 0 : i32
    return %c0_i32, %c0_i32_0 : i32, i32
  }
  func.func @transform_7(%arg0: i32) -> (i32, i32) {
    %c0_i32 = arith.constant 0 : i32
    %c0_i32_0 = arith.constant 0 : i32
    return %c0_i32, %arg0 : i32, i32
  }
}

</mosaic_0001>

<llo_original>
// kernel: ebm_forward.2
$region0: #{ebm_forward.2}
  #allocation0 [shape = 'u32[]', space=smem, size = 0x4, offset = 0x4, fixed_abs, tag = 'smem constant byte address 0x4 - core index']
  #allocation1 [shape = 'u32[144,128]{1,0:T(1,128)}', space=vmem, size = 0x12000, scoped, tag = 'internal scratch']
  #allocation2 [shape = 'u32[2048]{0}', space=vmem, size = 0x2000, scoped, tag = 'scoped memory for ebm_forward.2']
  #allocation3 [shape = 'u32[2048]{0}', space=vmem, size = 0x2000, scoped, tag = 'scoped memory for ebm_forward.2']
  #allocation4 [shape = 'u32[2048]{0}', space=vmem, size = 0x2000, scoped, tag = 'scoped memory for ebm_forward.2']
  #allocation5 [shape = 'u32[2048]{0}', space=vmem, size = 0x2000, scoped, tag = 'scoped memory for ebm_forward.2']
  #allocation6 [shape = 'u32[2048]{0}', space=vmem, size = 0x2000, scoped, tag = 'scoped memory for ebm_forward.2']
  #allocation7 [shape = 'f32[1,1]{1,0:T(1,128)S(6)}', space=smem, size = 0x200, scoped, tag = 'scoped memory for ebm_forward.2']
  %s0 = inlined_call_operand.vmem [shape: f32[128,2], index: 0, kind: input, shape index: {}]
  %s1 = inlined_call_operand.vmem [shape: f32[128,1], index: 1, kind: input, shape index: {}]
  %s2 = inlined_call_operand.vmem [shape: bf16[128,128], index: 2, kind: input, shape index: {}]
  %s3 = inlined_call_operand.vmem [shape: f32[128,1], index: 3, kind: input, shape index: {}]
  %s4 = inlined_call_operand.vmem [shape: bf16[1,128], index: 4, kind: input, shape index: {}]
  %s5 = inlined_call_operand.<no memory space> [shape: f32[1,1], index: 5, kind: input, shape index: {}]
  %s6 = inlined_call_operand.vmem [shape: f32[200,2], index: 6, kind: input, shape index: {}]
  %s7 = inlined_call_operand.<no memory space> [shape: f32[], index: 7, kind: input, shape index: {}]
  %s8 = inlined_call_operand.vmem [shape: f32[1,256], index: 8, kind: output, shape index: {}]
  %s9 = sld [smem:[#allocation0]]
  $region61: #{ebm_forward.2} parent=0
    _
  %s11 = ssub.s32 1, %s9
  %s12 = scalar_select 0, %s11, %s9
  %v13 = vstv %s7
  %14 = sst [smem:[#allocation7]] %s5
  loop: start=0, step=1, limit=4
  $region2: #{ebm_forward.2} parent=0 // loop_pre_header
    _
  $region3: #{ebm_forward.2} parent=0 // loop_header
    %s16 = sphi 0, %s20
    %p17 = scmp.ge.s32.totalorder %s16, 4
    %s26 = sphi 0, %s28
    %s29 = sphi 0, %s26
    %s30 = sphi 0, %s29
    %s46 = sphi 0, %s30
    %s50 = sphi 0, %s50
    %s52 = sphi 0, %s50
    %s53 = sphi 0, %s52
    %s67 = sphi 0, %s53
    %s71 = sphi 0, %s71
    %s73 = sphi 0, %s71
    %s74 = sphi 0, %s73
    %s88 = sphi 0, %s74
    %s92 = sphi 0, %s92
    %s94 = sphi 0, %s92
    %s95 = sphi 0, %s94
    %s109 = sphi 0, %s95
    %s113 = sphi 0, %s113
    %s115 = sphi 0, %s113
    %s116 = sphi 0, %s115
    %s130 = sphi 0, %s116
    %s134 = sphi 0, %s134
    %s136 = sphi 0, %s134
    %s137 = sphi 0, %s136
    %s151 = sphi 0, %s137
    %s155 = sphi 0, %s155
    %s157 = sphi 0, %s155
    %s158 = sphi 0, %s157
    %s172 = sphi 0, %s158
    %s178 = sphi 0, %s180
    %s181 = sphi 0, %s178
    %s182 = sphi 0, %s181
    %s198 = sphi 0, %s182
  $region4: #{ebm_forward.2} parent=0 // loop_header_branch
    %19 = sbr.rel (%p17) target = $region8
  $region5: #{ebm_forward.2} parent=0 // loop_body
    %s21 = ssub.s32 %s16, 1
    %s22 = ssub.s32 %s16, 2
    %s23 = sadd.s32 %s16, 1
    %s24 = ssub.s32 %s16, %s23
    %p25 = scmp.eq.s32.totalorder %s24, 0
    %s27 = sadd.s32 %s26, 1
    %s28 = scalar_select %p25, %s26, %s27
    %p31 = pneg %p25
    %p32 = scmp.eq.s32.totalorder %s16, 1
    %p33 = por %p31, %p32
    %p34 = scmp.ne.s32.totalorder %s26, %s29
    %p35 = scmp.eq.s32.totalorder %s16, 0
    %p36 = por %p34, %p35
    %p37 = scmp.ne.s32.totalorder %s26, %s29
    %p38 = scmp.eq.s32.totalorder %s21, 1
    %p39 = por %p37, %p38
    %p40 = scmp.ne.s32.totalorder %s29, %s30
    %p41 = scmp.eq.s32.totalorder %s21, 0
    %p42 = por %p40, %p41
    %p43 = scmp.ne.s32.totalorder %s29, %s30
    %p44 = scmp.eq.s32.totalorder %s22, 1
    %p45 = por %p43, %p44
    %p47 = scmp.ne.s32.totalorder %s30, %s46
    %p48 = scmp.eq.s32.totalorder %s22, 0
    %p49 = por %p47, %p48
    %s51 = sadd.s32 %s50, 1
    %p54 = scmp.eq.s32.totalorder %s16, 1
    %p55 = scmp.ne.s32.totalorder %s50, %s52
    %p56 = scmp.eq.s32.totalorder %s16, 0
    %p57 = por %p55, %p56
    %p58 = scmp.ne.s32.totalorder %s50, %s52
    %p59 = scmp.eq.s32.totalorder %s21, 1
    %p60 = por %p58, %p59
    %p61 = scmp.ne.s32.totalorder %s52, %s53
    %p62 = scmp.eq.s32.totalorder %s21, 0
    %p63 = por %p61, %p62
    %p64 = scmp.ne.s32.totalorder %s52, %s53
    %p65 = scmp.eq.s32.totalorder %s22, 1
    %p66 = por %p64, %p65
    %p68 = scmp.ne.s32.totalorder %s53, %s67
    %p69 = scmp.eq.s32.totalorder %s22, 0
    %p70 = por %p68, %p69
    %s72 = sadd.s32 %s71, 1
    %p75 = scmp.eq.s32.totalorder %s16, 1
    %p76 = scmp.ne.s32.totalorder %s71, %s73
    %p77 = scmp.eq.s32.totalorder %s16, 0
    %p78 = por %p76, %p77
    %p79 = scmp.ne.s32.totalorder %s71, %s73
    %p80 = scmp.eq.s32.totalorder %s21, 1
    %p81 = por %p79, %p80
    %p82 = scmp.ne.s32.totalorder %s73, %s74
    %p83 = scmp.eq.s32.totalorder %s21, 0
    %p84 = por %p82, %p83
    %p85 = scmp.ne.s32.totalorder %s73, %s74
    %p86 = scmp.eq.s32.totalorder %s22, 1
    %p87 = por %p85, %p86
    %p89 = scmp.ne.s32.totalorder %s74, %s88
    %p90 = scmp.eq.s32.totalorder %s22, 0
    %p91 = por %p89, %p90
    %s93 = sadd.s32 %s92, 1
    %p96 = scmp.eq.s32.totalorder %s16, 1
    %p97 = scmp.ne.s32.totalorder %s92, %s94
    %p98 = scmp.eq.s32.totalorder %s16, 0
    %p99 = por %p97, %p98
    %p100 = scmp.ne.s32.totalorder %s92, %s94
    %p101 = scmp.eq.s32.totalorder %s21, 1
    %p102 = por %p100, %p101
    %p103 = scmp.ne.s32.totalorder %s94, %s95
    %p104 = scmp.eq.s32.totalorder %s21, 0
    %p105 = por %p103, %p104
    %p106 = scmp.ne.s32.totalorder %s94, %s95
    %p107 = scmp.eq.s32.totalorder %s22, 1
    %p108 = por %p106, %p107
    %p110 = scmp.ne.s32.totalorder %s95, %s109
    %p111 = scmp.eq.s32.totalorder %s22, 0
    %p112 = por %p110, %p111
    %s114 = sadd.s32 %s113, 1
    %p117 = scmp.eq.s32.totalorder %s16, 1
    %p118 = scmp.ne.s32.totalorder %s113, %s115
    %p119 = scmp.eq.s32.totalorder %s16, 0
    %p120 = por %p118, %p119
    %p121 = scmp.ne.s32.totalorder %s113, %s115
    %p122 = scmp.eq.s32.totalorder %s21, 1
    %p123 = por %p121, %p122
    %p124 = scmp.ne.s32.totalorder %s115, %s116
    %p125 = scmp.eq.s32.totalorder %s21, 0
    %p126 = por %p124, %p125
    %p127 = scmp.ne.s32.totalorder %s115, %s116
    %p128 = scmp.eq.s32.totalorder %s22, 1
    %p129 = por %p127, %p128
    %p131 = scmp.ne.s32.totalorder %s116, %s130
    %p132 = scmp.eq.s32.totalorder %s22, 0
    %p133 = por %p131, %p132
    %s135 = sadd.s32 %s134, 1
    %p138 = scmp.eq.s32.totalorder %s16, 1
    %p139 = scmp.ne.s32.totalorder %s134, %s136
    %p140 = scmp.eq.s32.totalorder %s16, 0
    %p141 = por %p139, %p140
    %p142 = scmp.ne.s32.totalorder %s134, %s136
    %p143 = scmp.eq.s32.totalorder %s21, 1
    %p144 = por %p142, %p143
    %p145 = scmp.ne.s32.totalorder %s136, %s137
    %p146 = scmp.eq.s32.totalorder %s21, 0
    %p147 = por %p145, %p146
    %p148 = scmp.ne.s32.totalorder %s136, %s137
    %p149 = scmp.eq.s32.totalorder %s22, 1
    %p150 = por %p148, %p149
    %p152 = scmp.ne.s32.totalorder %s137, %s151
    %p153 = scmp.eq.s32.totalorder %s22, 0
    %p154 = por %p152, %p153
    %s156 = sadd.s32 %s155, 1
    %p159 = scmp.eq.s32.totalorder %s16, 1
    %p160 = scmp.ne.s32.totalorder %s155, %s157
    %p161 = scmp.eq.s32.totalorder %s16, 0
    %p162 = por %p160, %p161
    %p163 = scmp.ne.s32.totalorder %s155, %s157
    %p164 = scmp.eq.s32.totalorder %s21, 1
    %p165 = por %p163, %p164
    %p166 = scmp.ne.s32.totalorder %s157, %s158
    %p167 = scmp.eq.s32.totalorder %s21, 0
    %p168 = por %p166, %p167
    %p169 = scmp.ne.s32.totalorder %s157, %s158
    %p170 = scmp.eq.s32.totalorder %s22, 1
    %p171 = por %p169, %p170
    %p173 = scmp.ne.s32.totalorder %s158, %s172
    %p174 = scmp.eq.s32.totalorder %s22, 0
    %p175 = por %p173, %p174
    %s176 = ssub.s32 %s16, %s23
    %p177 = scmp.eq.s32.totalorder %s176, 0
    %s179 = sadd.s32 %s178, 1
    %s180 = scalar_select %p177, %s178, %s179
    %p183 = pneg %p177
    %p184 = scmp.eq.s32.totalorder %s16, 1
    %p185 = por %p183, %p184
    %p186 = scmp.ne.s32.totalorder %s178, %s181
    %p187 = scmp.eq.s32.totalorder %s16, 0
    %p188 = por %p186, %p187
    %p189 = scmp.ne.s32.totalorder %s178, %s181
    %p190 = scmp.eq.s32.totalorder %s21, 1
    %p191 = por %p189, %p190
    %p192 = scmp.ne.s32.totalorder %s181, %s182
    %p193 = scmp.eq.s32.totalorder %s21, 0
    %p194 = por %p192, %p193
    %p195 = scmp.ne.s32.totalorder %s181, %s182
    %p196 = scmp.eq.s32.totalorder %s22, 1
    %p197 = por %p195, %p196
    %p199 = scmp.ne.s32.totalorder %s182, %s198
    %p200 = scmp.eq.s32.totalorder %s22, 0
    %p201 = por %p199, %p200
    %p202 = scmp.le.s32.totalorder 1, %s16
    %p203 = scmp.lt.s32.totalorder %s16, 3
    %p204 = pnand %p202, %p203
    %p205 = pneg %p204
    // Predicated region
    $region9: #{ebm_forward.2} parent=5 // pred_check
      _
    $region10: #{ebm_forward.2} parent=5 // pred_check_branch
      %207 = sbr.rel (%p204) target = $region12
    $region11: #{ebm_forward.2} parent=5 // pred_region
      %s208 = ssub.s32 %s16, 1
      // Predicated region
      $region13: #{ebm_forward.2} parent=11 // pred_check
        %p209 = pneg %p63
      $region14: #{ebm_forward.2} parent=11 // pred_check_branch
        %211 = sbr.rel (%p209) target = $region16
      $region15: #{ebm_forward.2} parent=11 // pred_region
        _
      $region16: #{ebm_forward.2} parent=11 // pred_fallthru
        _
      // Predicated region
      $region17: #{ebm_forward.2} parent=11 // pred_check
        %p212 = pneg %p84
      $region18: #{ebm_forward.2} parent=11 // pred_check_branch
        %214 = sbr.rel (%p212) target = $region20
      $region19: #{ebm_forward.2} parent=11 // pred_region
        _
      $region20: #{ebm_forward.2} parent=11 // pred_fallthru
        _
      // Predicated region
      $region21: #{ebm_forward.2} parent=11 // pred_check
        %p215 = pneg %p105
      $region22: #{ebm_forward.2} parent=11 // pred_check_branch
        %217 = sbr.rel (%p215) target = $region24
      $region23: #{ebm_forward.2} parent=11 // pred_region
        _
      $region24: #{ebm_forward.2} parent=11 // pred_fallthru
        _
      // Predicated region
      $region25: #{ebm_forward.2} parent=11 // pred_check
        %p218 = pneg %p126
      $region26: #{ebm_forward.2} parent=11 // pred_check_branch
        %220 = sbr.rel (%p218) target = $region28
      $region27: #{ebm_forward.2} parent=11 // pred_region
        _
      $region28: #{ebm_forward.2} parent=11 // pred_fallthru
        _
      // Predicated region
      $region29: #{ebm_forward.2} parent=11 // pred_check
        %p221 = pneg %p147
      $region30: #{ebm_forward.2} parent=11 // pred_check_branch
        %223 = sbr.rel (%p221) target = $region32
      $region31: #{ebm_forward.2} parent=11 // pred_region
        _
      $region32: #{ebm_forward.2} parent=11 // pred_fallthru
        _
      // Predicated region
      $region33: #{ebm_forward.2} parent=11 // pred_check
        %p224 = pneg %p168
      $region34: #{ebm_forward.2} parent=11 // pred_check_branch
        %226 = sbr.rel (%p224) target = $region36
      $region35: #{ebm_forward.2} parent=11 // pred_region
        _
      $region36: #{ebm_forward.2} parent=11 // pred_fallthru
        _
    $region12: #{ebm_forward.2} parent=5 // pred_fallthru
      _
    %p227 = scmp.lt.s32.totalorder %s16, 2
    // Predicated region
    $region37: #{ebm_forward.2} parent=5 // pred_check
      %p228 = pneg %p227
    $region38: #{ebm_forward.2} parent=5 // pred_check_branch
      %230 = sbr.rel (%p228) target = $region40
    $region39: #{ebm_forward.2} parent=5 // pred_region
      // Predicated region
      $region41: #{ebm_forward.2} parent=39 // pred_check
        %p231 = pneg %p36
      $region42: #{ebm_forward.2} parent=39 // pred_check_branch
        %233 = sbr.rel (%p231) target = $region44
      $region43: #{ebm_forward.2} parent=39 // pred_region
        %s234 = ssub.s32 2, %s16
        %p235 = scmp.lt.s32.totalorder %s234, 1
        %s236 = scalar_select %p235, %s234, 1
        %s237 = smul.u32 32, %s236
        %p238 = scmp.lt.s32.totalorder %s16, 1
        %s239 = scalar_select %p238, %s16, 1
        %s240 = smul.addr %s239, 2
        %s241 = scalar_lea.vmem %s6, %s240
        %s242 = ssub.s32 2, %s16
        %p243 = scmp.lt.s32.totalorder %s242, 1
        %s244 = scalar_select %p243, %s242, 1
        %s245 = smul.u32 32, %s244
      $region44: #{ebm_forward.2} parent=39 // pred_fallthru
        _
    $region40: #{ebm_forward.2} parent=5 // pred_fallthru
      _
    %p246 = scmp.le.s32.totalorder 1, %s16
    %p247 = scmp.lt.s32.totalorder %s16, 3
    %p248 = pnand %p246, %p247
    %p249 = pneg %p248
    // Predicated region
    $region45: #{ebm_forward.2} parent=5 // pred_check
      _
    $region46: #{ebm_forward.2} parent=5 // pred_check_branch
      %251 = sbr.rel (%p248) target = $region48
    $region47: #{ebm_forward.2} parent=5 // pred_region
      #allocation8 [shape = 'u8[1024]{0}', space=vmem, size = 0x400, dematerialized = true, scoped, tag = 'FusionAdapter Buffer %fusion.1 = f32[2,256]{1,0:T(2,128)} fusion(%param_6.2, %param_7), kind=kLoop, calls=%fused_computation.2.clone, metadata={op_name="jit(ebm_forward)/transpose" stack_frame_id=8}']
      %s252 = ssub.s32 %s16, 1
      %s253 = ssub.s32 2, %s21
      %p254 = scmp.lt.s32.totalorder %s253, 1
      %s255 = scalar_select %p254, %s253, 1
      %s256 = smul.u32 32, %s255
      %p257 = scmp.lt.s32.totalorder %s21, 1
      %s258 = scalar_select %p257, %s21, 1
      %s259 = smul.addr %s258, 2
      %s260 = scalar_lea.vmem %s6, %s259
      %p261 = pneg %p42
      %p262 = pneg %p39
      %p263 = pneg %p63
      %p264 = pneg %p60
      %p265 = pneg %p84
      %p266 = pneg %p81
      %p267 = pneg %p105
      %p268 = pneg %p102
      %p269 = pneg %p126
      %p270 = pneg %p123
      %p271 = pneg %p147
      %p272 = pneg %p144
      %p273 = pneg %p168
      %p274 = pneg %p165
      %p275 = pneg %p194
      %p276 = pneg %p191
      %p277 = scmp.lt.s32.totalorder %s21, 1
      %s278 = scalar_select %p277, %s21, 1
      %s279 = scalar_lea.vmem %s8, %s278
      %s280 = ssub.s32 2, %s21
      %p281 = scmp.lt.s32.totalorder %s280, 1
      %s282 = scalar_select %p281, %s280, 1
      %s283 = smul.u32 32, %s282
      %p284 = scmp.lt.s32.totalorder %s21, 1
      %s285 = scalar_select %p284, %s21, 1
      %s286 = smul.addr %s285, 2
      %s287 = scalar_lea.vmem %s6, %s286
      %s288 = ssub.s32 2, %s21
      %p289 = scmp.lt.s32.totalorder %s288, 1
      %s290 = scalar_select %p289, %s288, 1
      %s291 = smul.u32 32, %s290
      %p292 = scmp.lt.s32.totalorder %s21, 1
      %s293 = scalar_select %p292, %s21, 1
      %s294 = scalar_lea.vmem %s8, %s293
      %s295 = ssub.s32 1, %s21
      %p296 = scmp.lt.s32.totalorder %s295, 0
      %s297 = scalar_select %p296, 0, 255
      %s298 = sand.u32 3, %s297
      %s299 = sand.u32 3, %s298
      %v300 = vld [vmem:[%s287] sm:%s299]
      %s301 = ssub.s32 1, %s21
      %v302 = vstv %s301
      %vm303 = vcmp.lt.s32.totalorder %v302, 0
      %v304 = vsel %vm303, %v13, %v300
      %v305 = vlaneseq
      %v306 = vshrl.u32 %v305, 7
      %vm308 = vcmp.lt.s32.totalorder %v306, 2
      %v309 = vsel %vm308, %v304, %v13
      %s310 = smul.addr %s21, 128
      %v311 = vlaneseq
      %v312 = vand.u32 %v311, 127
      %v313 = vstv %s310
      %v314 = vadd.s32 %v312, %v313
      %vm315 = vcmp.lt.s32.totalorder %v314, 200
      %v316 = vsel %vm315, %v309, %v13
      %s318 = ssub.s32 4, 1
      %319 = vst [vmem:[#allocation8] sm:%s318] %v316
      %v321 = vld [vmem:[#allocation8] sm:$0x3]
      %v322 = vld [vmem:[%s0] sm:$0xff]
      %v323 = vld [vmem:[%s0 + $0x8] sm:$0xff]
      %v324 = vld [vmem:[%s0 + $0x10] sm:$0xff]
      %v325 = vld [vmem:[%s0 + $0x18] sm:$0xff]
      %v326 = vld [vmem:[%s0 + $0x20] sm:$0xff]
      %v327 = vld [vmem:[%s0 + $0x28] sm:$0xff]
      %v328 = vld [vmem:[%s0 + $0x30] sm:$0xff]
      %v329 = vld [vmem:[%s0 + $0x38] sm:$0xff]
      %v330 = vld [vmem:[%s0 + $0x40] sm:$0xff]
      %v331 = vld [vmem:[%s0 + $0x48] sm:$0xff]
      %v332 = vld [vmem:[%s0 + $0x50] sm:$0xff]
      %v333 = vld [vmem:[%s0 + $0x58] sm:$0xff]
      %v334 = vld [vmem:[%s0 + $0x60] sm:$0xff]
      %v335 = vld [vmem:[%s0 + $0x68] sm:$0xff]
      %v336 = vld [vmem:[%s0 + $0x70] sm:$0xff]
      %v337 = vld [vmem:[%s0 + $0x78] sm:$0xff]
      %339 = vset.pattern.permute.xlu0 0
      %340 = vperm.xlu0 %339, %v322
      %v341 = vpop.permute.xlu0 %340
      %344 = vset.pattern.permute.xlu0 0
      %345 = vperm.xlu0 %344, %v323
      %v346 = vpop.permute.xlu0 %345
      %349 = vset.pattern.permute.xlu0 0
      %350 = vperm.xlu0 %349, %v324
      %v351 = vpop.permute.xlu0 %350
      %354 = vset.pattern.permute.xlu0 0
      %355 = vperm.xlu0 %354, %v325
      %v356 = vpop.permute.xlu0 %355
      %359 = vset.pattern.permute.xlu0 0
      %360 = vperm.xlu0 %359, %v326
      %v361 = vpop.permute.xlu0 %360
      %364 = vset.pattern.permute.xlu0 0
      %365 = vperm.xlu0 %364, %v327
      %v366 = vpop.permute.xlu0 %365
      %369 = vset.pattern.permute.xlu0 0
      %370 = vperm.xlu0 %369, %v328
      %v371 = vpop.permute.xlu0 %370
      %374 = vset.pattern.permute.xlu0 0
      %375 = vperm.xlu0 %374, %v329
      %v376 = vpop.permute.xlu0 %375
      %379 = vset.pattern.permute.xlu0 0
      %380 = vperm.xlu0 %379, %v330
      %v381 = vpop.permute.xlu0 %380
      %384 = vset.pattern.permute.xlu0 0
      %385 = vperm.xlu0 %384, %v331
      %v386 = vpop.permute.xlu0 %385
      %389 = vset.pattern.permute.xlu0 0
      %390 = vperm.xlu0 %389, %v332
      %v391 = vpop.permute.xlu0 %390
      %394 = vset.pattern.permute.xlu0 0
      %395 = vperm.xlu0 %394, %v333
      %v396 = vpop.permute.xlu0 %395
      %399 = vset.pattern.permute.xlu0 0
      %400 = vperm.xlu0 %399, %v334
      %v401 = vpop.permute.xlu0 %400
      %404 = vset.pattern.permute.xlu0 0
      %405 = vperm.xlu0 %404, %v335
      %v406 = vpop.permute.xlu0 %405
      %409 = vset.pattern.permute.xlu0 0
      %410 = vperm.xlu0 %409, %v336
      %v411 = vpop.permute.xlu0 %410
      %414 = vset.pattern.permute.xlu0 0
      %415 = vperm.xlu0 %414, %v337
      %v416 = vpop.permute.xlu0 %415
      %v418 = vlaneseq
      %v419 = vshrl.u32 %v418, 7
      %v420 = vsub.s32 0, %v419
      %v421 = vrot.slane %v321, %v420
      %v422 = vmul.f32 %v341, %v421
      %v423 = vmul.f32 %v346, %v421
      %v424 = vmul.f32 %v351, %v421
      %v425 = vmul.f32 %v356, %v421
      %v426 = vmul.f32 %v361, %v421
      %v427 = vmul.f32 %v366, %v421
      %v428 = vmul.f32 %v371, %v421
      %v429 = vmul.f32 %v376, %v421
      %v430 = vmul.f32 %v381, %v421
      %v431 = vmul.f32 %v386, %v421
      %v432 = vmul.f32 %v391, %v421
      %v433 = vmul.f32 %v396, %v421
      %v434 = vmul.f32 %v401, %v421
      %v435 = vmul.f32 %v406, %v421
      %v436 = vmul.f32 %v411, %v421
      %v437 = vmul.f32 %v416, %v421
      %438 = vset.pattern.permute.xlu0 1
      %439 = vperm.xlu0 %438, %v322
      %v440 = vpop.permute.xlu0 %439
      %442 = vset.pattern.permute.xlu0 1
      %443 = vperm.xlu0 %442, %v323
      %v444 = vpop.permute.xlu0 %443
      %446 = vset.pattern.permute.xlu0 1
      %447 = vperm.xlu0 %446, %v324
      %v448 = vpop.permute.xlu0 %447
      %450 = vset.pattern.permute.xlu0 1
      %451 = vperm.xlu0 %450, %v325
      %v452 = vpop.permute.xlu0 %451
      %454 = vset.pattern.permute.xlu0 1
      %455 = vperm.xlu0 %454, %v326
      %v456 = vpop.permute.xlu0 %455
      %458 = vset.pattern.permute.xlu0 1
      %459 = vperm.xlu0 %458, %v327
      %v460 = vpop.permute.xlu0 %459
      %462 = vset.pattern.permute.xlu0 1
      %463 = vperm.xlu0 %462, %v328
      %v464 = vpop.permute.xlu0 %463
      %466 = vset.pattern.permute.xlu0 1
      %467 = vperm.xlu0 %466, %v329
      %v468 = vpop.permute.xlu0 %467
      %470 = vset.pattern.permute.xlu0 1
      %471 = vperm.xlu0 %470, %v330
      %v472 = vpop.permute.xlu0 %471
      %474 = vset.pattern.permute.xlu0 1
      %475 = vperm.xlu0 %474, %v331
      %v476 = vpop.permute.xlu0 %475
      %478 = vset.pattern.permute.xlu0 1
      %479 = vperm.xlu0 %478, %v332
      %v480 = vpop.permute.xlu0 %479
      %482 = vset.pattern.permute.xlu0 1
      %483 = vperm.xlu0 %482, %v333
      %v484 = vpop.permute.xlu0 %483
      %486 = vset.pattern.permute.xlu0 1
      %487 = vperm.xlu0 %486, %v334
      %v488 = vpop.permute.xlu0 %487
      %490 = vset.pattern.permute.xlu0 1
      %491 = vperm.xlu0 %490, %v335
      %v492 = vpop.permute.xlu0 %491
      %494 = vset.pattern.permute.xlu0 1
      %495 = vperm.xlu0 %494, %v336
      %v496 = vpop.permute.xlu0 %495
      %498 = vset.pattern.permute.xlu0 1
      %499 = vperm.xlu0 %498, %v337
      %v500 = vpop.permute.xlu0 %499
      %v502 = vlaneseq
      %v503 = vshrl.u32 %v502, 7
      %v504 = vsub.s32 1, %v503
      %v505 = vrot.slane %v321, %v504
      %v506 = vmul.f32 %v440, %v505
      %v507 = vmul.f32 %v444, %v505
      %v508 = vmul.f32 %v448, %v505
      %v509 = vmul.f32 %v452, %v505
      %v510 = vmul.f32 %v456, %v505
      %v511 = vmul.f32 %v460, %v505
      %v512 = vmul.f32 %v464, %v505
      %v513 = vmul.f32 %v468, %v505
      %v514 = vmul.f32 %v472, %v505
      %v515 = vmul.f32 %v476, %v505
      %v516 = vmul.f32 %v480, %v505
      %v517 = vmul.f32 %v484, %v505
      %v518 = vmul.f32 %v488, %v505
      %v519 = vmul.f32 %v492, %v505
      %v520 = vmul.f32 %v496, %v505
      %v521 = vmul.f32 %v500, %v505
      %v522 = vadd.f32 %v422, %v506
      %v523 = vadd.f32 %v423, %v507
      %v524 = vadd.f32 %v424, %v508
      %v525 = vadd.f32 %v425, %v509
      %v526 = vadd.f32 %v426, %v510
      %v527 = vadd.f32 %v427, %v511
      %v528 = vadd.f32 %v428, %v512
      %v529 = vadd.f32 %v429, %v513
      %v530 = vadd.f32 %v430, %v514
      %v531 = vadd.f32 %v431, %v515
      %v532 = vadd.f32 %v432, %v516
      %v533 = vadd.f32 %v433, %v517
      %v534 = vadd.f32 %v434, %v518
      %v535 = vadd.f32 %v435, %v519
      %v536 = vadd.f32 %v436, %v520
      %v537 = vadd.f32 %v437, %v521
      %v538 = vld [vmem:[%s1] sm:$0xff]
      %v539 = vld [vmem:[%s1 + $0x8] sm:$0xff]
      %v540 = vld [vmem:[%s1 + $0x10] sm:$0xff]
      %v541 = vld [vmem:[%s1 + $0x18] sm:$0xff]
      %v542 = vld [vmem:[%s1 + $0x20] sm:$0xff]
      %v543 = vld [vmem:[%s1 + $0x28] sm:$0xff]
      %v544 = vld [vmem:[%s1 + $0x30] sm:$0xff]
      %v545 = vld [vmem:[%s1 + $0x38] sm:$0xff]
      %v546 = vld [vmem:[%s1 + $0x40] sm:$0xff]
      %v547 = vld [vmem:[%s1 + $0x48] sm:$0xff]
      %v548 = vld [vmem:[%s1 + $0x50] sm:$0xff]
      %v549 = vld [vmem:[%s1 + $0x58] sm:$0xff]
      %v550 = vld [vmem:[%s1 + $0x60] sm:$0xff]
      %v551 = vld [vmem:[%s1 + $0x68] sm:$0xff]
      %v552 = vld [vmem:[%s1 + $0x70] sm:$0xff]
      %v553 = vld [vmem:[%s1 + $0x78] sm:$0xff]
      %555 = vset.pattern.permute.xlu0 0
      %556 = vperm.xlu0 %555, %v538
      %v557 = vpop.permute.xlu0 %556
      %560 = vset.pattern.permute.xlu0 0
      %561 = vperm.xlu0 %560, %v539
      %v562 = vpop.permute.xlu0 %561
      %565 = vset.pattern.permute.xlu0 0
      %566 = vperm.xlu0 %565, %v540
      %v567 = vpop.permute.xlu0 %566
      %570 = vset.pattern.permute.xlu0 0
      %571 = vperm.xlu0 %570, %v541
      %v572 = vpop.permute.xlu0 %571
      %575 = vset.pattern.permute.xlu0 0
      %576 = vperm.xlu0 %575, %v542
      %v577 = vpop.permute.xlu0 %576
      %580 = vset.pattern.permute.xlu0 0
      %581 = vperm.xlu0 %580, %v543
      %v582 = vpop.permute.xlu0 %581
      %585 = vset.pattern.permute.xlu0 0
      %586 = vperm.xlu0 %585, %v544
      %v587 = vpop.permute.xlu0 %586
      %590 = vset.pattern.permute.xlu0 0
      %591 = vperm.xlu0 %590, %v545
      %v592 = vpop.permute.xlu0 %591
      %595 = vset.pattern.permute.xlu0 0
      %596 = vperm.xlu0 %595, %v546
      %v597 = vpop.permute.xlu0 %596
      %600 = vset.pattern.permute.xlu0 0
      %601 = vperm.xlu0 %600, %v547
      %v602 = vpop.permute.xlu0 %601
      %605 = vset.pattern.permute.xlu0 0
      %606 = vperm.xlu0 %605, %v548
      %v607 = vpop.permute.xlu0 %606
      %610 = vset.pattern.permute.xlu0 0
      %611 = vperm.xlu0 %610, %v549
      %v612 = vpop.permute.xlu0 %611
      %615 = vset.pattern.permute.xlu0 0
      %616 = vperm.xlu0 %615, %v550
      %v617 = vpop.permute.xlu0 %616
      %620 = vset.pattern.permute.xlu0 0
      %621 = vperm.xlu0 %620, %v551
      %v622 = vpop.permute.xlu0 %621
      %625 = vset.pattern.permute.xlu0 0
      %626 = vperm.xlu0 %625, %v552
      %v627 = vpop.permute.xlu0 %626
      %630 = vset.pattern.permute.xlu0 0
      %631 = vperm.xlu0 %630, %v553
      %v632 = vpop.permute.xlu0 %631
      %v634 = vadd.f32 %v522, %v557
      %v635 = vadd.f32 %v523, %v562
      %v636 = vadd.f32 %v524, %v567
      %v637 = vadd.f32 %v525, %v572
      %v638 = vadd.f32 %v526, %v577
      %v639 = vadd.f32 %v527, %v582
      %v640 = vadd.f32 %v528, %v587
      %v641 = vadd.f32 %v529, %v592
      %v642 = vadd.f32 %v530, %v597
      %v643 = vadd.f32 %v531, %v602
      %v644 = vadd.f32 %v532, %v607
      %v645 = vadd.f32 %v533, %v612
      %v646 = vadd.f32 %v534, %v617
      %v647 = vadd.f32 %v535, %v622
      %v648 = vadd.f32 %v536, %v627
      %v649 = vadd.f32 %v537, %v632
      %v650 = vmul.f32 %v634, 0.2
      %v651 = vmul.f32 %v635, 0.2
      %v652 = vmul.f32 %v636, 0.2
      %v653 = vmul.f32 %v637, 0.2
      %v654 = vmul.f32 %v638, 0.2
      %v655 = vmul.f32 %v639, 0.2
      %v656 = vmul.f32 %v640, 0.2
      %v657 = vmul.f32 %v641, 0.2
      %v658 = vmul.f32 %v642, 0.2
      %v659 = vmul.f32 %v643, 0.2
      %v660 = vmul.f32 %v644, 0.2
      %v661 = vmul.f32 %v645, 0.2
      %v662 = vmul.f32 %v646, 0.2
      %v663 = vmul.f32 %v647, 0.2
      %v664 = vmul.f32 %v648, 0.2
      %v665 = vmul.f32 %v649, 0.2
      %v666 = vmax.f32 %v634, %v650
      %v667 = vmax.f32 %v635, %v651
      %v668 = vmax.f32 %v636, %v652
      %v669 = vmax.f32 %v637, %v653
      %v670 = vmax.f32 %v638, %v654
      %v671 = vmax.f32 %v639, %v655
      %v672 = vmax.f32 %v640, %v656
      %v673 = vmax.f32 %v641, %v657
      %v674 = vmax.f32 %v642, %v658
      %v675 = vmax.f32 %v643, %v659
      %v676 = vmax.f32 %v644, %v660
      %v677 = vmax.f32 %v645, %v661
      %v678 = vmax.f32 %v646, %v662
      %v679 = vmax.f32 %v647, %v663
      %v680 = vmax.f32 %v648, %v664
      %v681 = vmax.f32 %v649, %v665
      %v682 = vld [vmem:[%s2] sm:$0xf]
      %v683 = vld [vmem:[%s2 + $0x4] sm:$0xf]
      %v684 = vld [vmem:[%s2 + $0x8] sm:$0xf]
      %v685 = vld [vmem:[%s2 + $0xc] sm:$0xf]
      %v686 = vld [vmem:[%s2 + $0x10] sm:$0xf]
      %v687 = vld [vmem:[%s2 + $0x14] sm:$0xf]
      %v688 = vld [vmem:[%s2 + $0x18] sm:$0xf]
      %v689 = vld [vmem:[%s2 + $0x1c] sm:$0xf]
      %v690 = vld [vmem:[%s2 + $0x20] sm:$0xf]
      %v691 = vld [vmem:[%s2 + $0x24] sm:$0xf]
      %v692 = vld [vmem:[%s2 + $0x28] sm:$0xf]
      %v693 = vld [vmem:[%s2 + $0x2c] sm:$0xf]
      %v694 = vld [vmem:[%s2 + $0x30] sm:$0xf]
      %v695 = vld [vmem:[%s2 + $0x34] sm:$0xf]
      %v696 = vld [vmem:[%s2 + $0x38] sm:$0xf]
      %v697 = vld [vmem:[%s2 + $0x3c] sm:$0xf]
      %v698 = vpack.c.bf16 %v667, %v666
      %v699 = vpack.c.bf16 %v669, %v668
      %v700 = vpack.c.bf16 %v671, %v670
      %v701 = vpack.c.bf16 %v673, %v672
      %v702 = vpack.c.bf16 %v675, %v674
      %v703 = vpack.c.bf16 %v677, %v676
      %v704 = vpack.c.bf16 %v679, %v678
      %v705 = vpack.c.bf16 %v681, %v680
      %v706 = vld [vmem:[%s3] sm:$0xff]
      %v707 = vld [vmem:[%s3 + $0x8] sm:$0xff]
      %v708 = vld [vmem:[%s3 + $0x10] sm:$0xff]
      %v709 = vld [vmem:[%s3 + $0x18] sm:$0xff]
      %v710 = vld [vmem:[%s3 + $0x20] sm:$0xff]
      %v711 = vld [vmem:[%s3 + $0x28] sm:$0xff]
      %v712 = vld [vmem:[%s3 + $0x30] sm:$0xff]
      %v713 = vld [vmem:[%s3 + $0x38] sm:$0xff]
      %v714 = vld [vmem:[%s3 + $0x40] sm:$0xff]
      %v715 = vld [vmem:[%s3 + $0x48] sm:$0xff]
      %v716 = vld [vmem:[%s3 + $0x50] sm:$0xff]
      %v717 = vld [vmem:[%s3 + $0x58] sm:$0xff]
      %v718 = vld [vmem:[%s3 + $0x60] sm:$0xff]
      %v719 = vld [vmem:[%s3 + $0x68] sm:$0xff]
      %v720 = vld [vmem:[%s3 + $0x70] sm:$0xff]
      %v721 = vld [vmem:[%s3 + $0x78] sm:$0xff]
      %723 = vset.pattern.permute.xlu0 0
      %724 = vperm.xlu0 %723, %v706
      %v725 = vpop.permute.xlu0 %724
      %728 = vset.pattern.permute.xlu0 0
      %729 = vperm.xlu0 %728, %v707
      %v730 = vpop.permute.xlu0 %729
      %733 = vset.pattern.permute.xlu0 0
      %734 = vperm.xlu0 %733, %v708
      %v735 = vpop.permute.xlu0 %734
      %738 = vset.pattern.permute.xlu0 0
      %739 = vperm.xlu0 %738, %v709
      %v740 = vpop.permute.xlu0 %739
      %743 = vset.pattern.permute.xlu0 0
      %744 = vperm.xlu0 %743, %v710
      %v745 = vpop.permute.xlu0 %744
      %748 = vset.pattern.permute.xlu0 0
      %749 = vperm.xlu0 %748, %v711
      %v750 = vpop.permute.xlu0 %749
      %753 = vset.pattern.permute.xlu0 0
      %754 = vperm.xlu0 %753, %v712
      %v755 = vpop.permute.xlu0 %754
      %758 = vset.pattern.permute.xlu0 0
      %759 = vperm.xlu0 %758, %v713
      %v760 = vpop.permute.xlu0 %759
      %763 = vset.pattern.permute.xlu0 0
      %764 = vperm.xlu0 %763, %v714
      %v765 = vpop.permute.xlu0 %764
      %768 = vset.pattern.permute.xlu0 0
      %769 = vperm.xlu0 %768, %v715
      %v770 = vpop.permute.xlu0 %769
      %773 = vset.pattern.permute.xlu0 0
      %774 = vperm.xlu0 %773, %v716
      %v775 = vpop.permute.xlu0 %774
      %778 = vset.pattern.permute.xlu0 0
      %779 = vperm.xlu0 %778, %v717
      %v780 = vpop.permute.xlu0 %779
      %783 = vset.pattern.permute.xlu0 0
      %784 = vperm.xlu0 %783, %v718
      %v785 = vpop.permute.xlu0 %784
      %788 = vset.pattern.permute.xlu0 0
      %789 = vperm.xlu0 %788, %v719
      %v790 = vpop.permute.xlu0 %789
      %793 = vset.pattern.permute.xlu0 0
      %794 = vperm.xlu0 %793, %v720
      %v795 = vpop.permute.xlu0 %794
      %798 = vset.pattern.permute.xlu0 0
      %799 = vperm.xlu0 %798, %v721
      %v800 = vpop.permute.xlu0 %799
      %v818 = vunpack.c.l.b16 %v682
      %v819 = vunpack.c.l.b16 %v683
      %v820 = vunpack.c.l.b16 %v684
      %v821 = vunpack.c.l.b16 %v685
      %v822 = vunpack.c.l.b16 %v686
      %v823 = vunpack.c.l.b16 %v687
      %v824 = vunpack.c.l.b16 %v688
      %v825 = vunpack.c.l.b16 %v689
      %v826 = vunpack.c.l.b16 %v690
      %v827 = vunpack.c.l.b16 %v691
      %v828 = vunpack.c.l.b16 %v692
      %v829 = vunpack.c.l.b16 %v693
      %v830 = vunpack.c.l.b16 %v694
      %v831 = vunpack.c.l.b16 %v695
      %v832 = vunpack.c.l.b16 %v696
      %v833 = vunpack.c.l.b16 %v697
      %v834 = vpack.c.b16 %v819, %v818
      %v835 = vpack.c.b16 %v821, %v820
      %v836 = vpack.c.b16 %v823, %v822
      %v837 = vpack.c.b16 %v825, %v824
      %v838 = vpack.c.b16 %v827, %v826
      %v839 = vpack.c.b16 %v829, %v828
      %v840 = vpack.c.b16 %v831, %v830
      %v841 = vpack.c.b16 %v833, %v832
      %850 = vmatprep.subr.bf16.mxu0 0
      %851 = vmatpush1.bf16.msra.mxu0 %v705
      %852 = vmatprep.subr.bf16.mxu0 0
      %853 = vmatpush1.bf16.msra.mxu0 %v704
      %854 = vmatprep.subr.bf16.mxu0 0
      %855 = vmatpush1.bf16.msra.mxu0 %v703
      %856 = vmatprep.subr.bf16.mxu0 0
      %857 = vmatpush1.bf16.msra.mxu0 %v702
      %858 = vmatprep.subr.bf16.mxu0 0
      %859 = vmatpush1.bf16.msra.mxu0 %v701
      %860 = vmatprep.subr.bf16.mxu0 0
      %861 = vmatpush1.bf16.msra.mxu0 %v700
      %862 = vmatprep.subr.bf16.mxu0 0
      %863 = vmatpush1.bf16.msra.mxu0 %v699
      %864 = vmatprep.subr.bf16.mxu0 0
      %865 = vmatpush1.bf16.msra.mxu0 %v698
      %866 = vmatprep.subr.bf16.mxu0 0
      %867 = vmatpush2.bf16.msra.mxu0 0
      %868 = vmatprep.subr.bf16.mxu0 0
      %869 = vmatpush2.bf16.msra.mxu0 0
      %870 = vmatprep.subr.bf16.mxu0 0
      %871 = vmatpush2.bf16.msra.mxu0 0
      %872 = vmatprep.subr.bf16.mxu0 0
      %873 = vmatpush2.bf16.msra.mxu0 0
      %874 = vmatprep.subr.bf16.mxu0 0
      %875 = vmatpush2.bf16.msra.mxu0 0
      %876 = vmatprep.subr.bf16.mxu0 0
      %877 = vmatpush2.bf16.msra.mxu0 0
      %878 = vmatprep.subr.bf16.mxu0 0
      %879 = vmatpush2.bf16.msra.mxu0 0
      %880 = vmatprep.subr.bf16.mxu0 0
      %881 = vmatpush2.bf16.msra.mxu0 0
      %882 = vmatprep.mubr.bf16.mxu0 0
      %883 = vmatmul.mubr.bf16.gmra.mxu0 %v834
      %v884 = vpop.f32.mrf.mxu0
      %v885 = vadd.f32 %v725, %v884
      %v886 = vpop.f32.mrf.mxu0
      %v887 = vpop.f32.mrf.mxu0
      %v888 = vadd.f32 %v730, %v887
      %v889 = vpop.f32.mrf.mxu0
      %890 = vmatprep.mubr.bf16.mxu0 0
      %891 = vmatmul.mubr.bf16.gmra.mxu0 %v835
      %v892 = vpop.f32.mrf.mxu0
      %v893 = vadd.f32 %v735, %v892
      %v894 = vpop.f32.mrf.mxu0
      %v895 = vpop.f32.mrf.mxu0
      %v896 = vadd.f32 %v740, %v895
      %v897 = vpop.f32.mrf.mxu0
      %898 = vmatprep.mubr.bf16.mxu0 0
      %899 = vmatmul.mubr.bf16.gmra.mxu0 %v836
      %v900 = vpop.f32.mrf.mxu0
      %v901 = vadd.f32 %v745, %v900
      %v902 = vpop.f32.mrf.mxu0
      %v903 = vpop.f32.mrf.mxu0
      %v904 = vadd.f32 %v750, %v903
      %v905 = vpop.f32.mrf.mxu0
      %906 = vmatprep.mubr.bf16.mxu0 0
      %907 = vmatmul.mubr.bf16.gmra.mxu0 %v837
      %v908 = vpop.f32.mrf.mxu0
      %v909 = vadd.f32 %v755, %v908
      %v910 = vpop.f32.mrf.mxu0
      %v911 = vpop.f32.mrf.mxu0
      %v912 = vadd.f32 %v760, %v911
      %v913 = vpop.f32.mrf.mxu0
      %914 = vmatprep.mubr.bf16.mxu0 0
      %915 = vmatmul.mubr.bf16.gmra.mxu0 %v838
      %v916 = vpop.f32.mrf.mxu0
      %v917 = vadd.f32 %v765, %v916
      %v918 = vpop.f32.mrf.mxu0
      %v919 = vpop.f32.mrf.mxu0
      %v920 = vadd.f32 %v770, %v919
      %v921 = vpop.f32.mrf.mxu0
      %922 = vmatprep.mubr.bf16.mxu0 0
      %923 = vmatmul.mubr.bf16.gmra.mxu0 %v839
      %v924 = vpop.f32.mrf.mxu0
      %v925 = vadd.f32 %v775, %v924
      %v926 = vpop.f32.mrf.mxu0
      %v927 = vpop.f32.mrf.mxu0
      %v928 = vadd.f32 %v780, %v927
      %v929 = vpop.f32.mrf.mxu0
      %930 = vmatprep.mubr.bf16.mxu0 0
      %931 = vmatmul.mubr.bf16.gmra.mxu0 %v840
      %v932 = vpop.f32.mrf.mxu0
      %v933 = vadd.f32 %v785, %v932
      %v934 = vpop.f32.mrf.mxu0
      %v935 = vpop.f32.mrf.mxu0
      %v936 = vadd.f32 %v790, %v935
      %v937 = vpop.f32.mrf.mxu0
      %938 = vmatprep.mubr.bf16.mxu0 0
      %939 = vmatmul.mubr.bf16.gmra.mxu0 %v841
      %v940 = vpop.f32.mrf.mxu0
      %v941 = vadd.f32 %v795, %v940
      %v942 = vpop.f32.mrf.mxu0
      %v943 = vpop.f32.mrf.mxu0
      %v944 = vadd.f32 %v800, %v943
      %v945 = vpop.f32.mrf.mxu0
      %946 = vdwg.mxu0
      %v947 = vmul.f32 %v885, 0.2
      %v948 = vmul.f32 %v888, 0.2
      %v949 = vmul.f32 %v893, 0.2
      %v950 = vmul.f32 %v896, 0.2
      %v951 = vmul.f32 %v901, 0.2
      %v952 = vmul.f32 %v904, 0.2
      %v953 = vmul.f32 %v909, 0.2
      %v954 = vmul.f32 %v912, 0.2
      %v955 = vmul.f32 %v917, 0.2
      %v956 = vmul.f32 %v920, 0.2
      %v957 = vmul.f32 %v925, 0.2
      %v958 = vmul.f32 %v928, 0.2
      %v959 = vmul.f32 %v933, 0.2
      %v960 = vmul.f32 %v936, 0.2
      %v961 = vmul.f32 %v941, 0.2
      %v962 = vmul.f32 %v944, 0.2
      %v963 = vmax.f32 %v885, %v947
      %v964 = vmax.f32 %v888, %v948
      %v965 = vmax.f32 %v893, %v949
      %v966 = vmax.f32 %v896, %v950
      %v967 = vmax.f32 %v901, %v951
      %v968 = vmax.f32 %v904, %v952
      %v969 = vmax.f32 %v909, %v953
      %v970 = vmax.f32 %v912, %v954
      %v971 = vmax.f32 %v917, %v955
      %v972 = vmax.f32 %v920, %v956
      %v973 = vmax.f32 %v925, %v957
      %v974 = vmax.f32 %v928, %v958
      %v975 = vmax.f32 %v933, %v959
      %v976 = vmax.f32 %v936, %v960
      %v977 = vmax.f32 %v941, %v961
      %v978 = vmax.f32 %v944, %v962
      %v979 = vld [vmem:[%s4] sm:$0x1]
      %v980 = vpack.c.bf16 %v964, %v963
      %v981 = vpack.c.bf16 %v966, %v965
      %v982 = vpack.c.bf16 %v968, %v967
      %v983 = vpack.c.bf16 %v970, %v969
      %v984 = vpack.c.bf16 %v972, %v971
      %v985 = vpack.c.bf16 %v974, %v973
      %v986 = vpack.c.bf16 %v976, %v975
      %v987 = vpack.c.bf16 %v978, %v977
      %s988 = sld [smem:[#allocation7]]
      %v989 = vstv %s988
      %990 = vmatprep.subr.bf16.mxu0 0
      %991 = vmatpush1.bf16.msra.mxu0 %v987
      %992 = vmatprep.subr.bf16.mxu0 0
      %993 = vmatpush1.bf16.msra.mxu0 %v986
      %994 = vmatprep.subr.bf16.mxu0 0
      %995 = vmatpush1.bf16.msra.mxu0 %v985
      %996 = vmatprep.subr.bf16.mxu0 0
      %997 = vmatpush1.bf16.msra.mxu0 %v984
      %998 = vmatprep.subr.bf16.mxu0 0
      %999 = vmatpush1.bf16.msra.mxu0 %v983
      %1000 = vmatprep.subr.bf16.mxu0 0
      %1001 = vmatpush1.bf16.msra.mxu0 %v982
      %1002 = vmatprep.subr.bf16.mxu0 0
      %1003 = vmatpush1.bf16.msra.mxu0 %v981
      %1004 = vmatprep.subr.bf16.mxu0 0
      %1005 = vmatpush1.bf16.msra.mxu0 %v980
      %1006 = vmatprep.subr.bf16.mxu0 0
      %1007 = vmatpush2.bf16.msra.mxu0 0
      %1008 = vmatprep.subr.bf16.mxu0 0
      %1009 = vmatpush2.bf16.msra.mxu0 0
      %1010 = vmatprep.subr.bf16.mxu0 0
      %1011 = vmatpush2.bf16.msra.mxu0 0
      %1012 = vmatprep.subr.bf16.mxu0 0
      %1013 = vmatpush2.bf16.msra.mxu0 0
      %1014 = vmatprep.subr.bf16.mxu0 0
      %1015 = vmatpush2.bf16.msra.mxu0 0
      %1016 = vmatprep.subr.bf16.mxu0 0
      %1017 = vmatpush2.bf16.msra.mxu0 0
      %1018 = vmatprep.subr.bf16.mxu0 0
      %1019 = vmatpush2.bf16.msra.mxu0 0
      %1020 = vmatprep.subr.bf16.mxu0 0
      %1021 = vmatpush2.bf16.msra.mxu0 0
      %1022 = vmatprep.mubr.bf16.mxu0 0
      %1023 = vmatmul.mubr.bf16.gmra.mxu0 %v979
      %v1024 = vpop.f32.mrf.mxu0
      %v1025 = vadd.f32 %v989, %v1024
      %v1026 = vpop.f32.mrf.mxu0
      %v1027 = vpop.f32.mrf.mxu0
      %v1028 = vpop.f32.mrf.mxu0
      %1029 = vdwg.mxu0
      %1030 = vst [vmem:[%s294] sm:$0x1] %v1025
      %p1031 = scmp.lt.s32.totalorder %s21, 1
      %s1032 = scalar_select %p1031, %s21, 1
      %s1033 = scalar_lea.vmem %s8, %s1032
      // Predicated region
      $region49: #{ebm_forward.2} parent=47 // pred_check
        %p1034 = pneg %p191
      $region50: #{ebm_forward.2} parent=47 // pred_check_branch
        %1036 = sbr.rel (%p1034) target = $region52
      $region51: #{ebm_forward.2} parent=47 // pred_region
        _
      $region52: #{ebm_forward.2} parent=47 // pred_fallthru
        _
    $region48: #{ebm_forward.2} parent=5 // pred_fallthru
      _
    %p1037 = scmp.le.s32.totalorder 2, %s16
    // Predicated region
    $region53: #{ebm_forward.2} parent=5 // pred_check
      %p1038 = pneg %p1037
    $region54: #{ebm_forward.2} parent=5 // pred_check_branch
      %1040 = sbr.rel (%p1038) target = $region56
    $region55: #{ebm_forward.2} parent=5 // pred_region
      %s1041 = ssub.s32 %s16, 2
      // Predicated region
      $region57: #{ebm_forward.2} parent=55 // pred_check
        %p1042 = pneg %p197
      $region58: #{ebm_forward.2} parent=55 // pred_check_branch
        %1044 = sbr.rel (%p1042) target = $region60
      $region59: #{ebm_forward.2} parent=55 // pred_region
        %p1045 = scmp.lt.s32.totalorder %s22, 1
        %s1046 = scalar_select %p1045, %s22, 1
        %s1047 = scalar_lea.vmem %s8, %s1046
      $region60: #{ebm_forward.2} parent=55 // pred_fallthru
        _
    $region56: #{ebm_forward.2} parent=5 // pred_fallthru
      _
  $region6: #{ebm_forward.2} parent=0 // loop_footer
    %s20 = sadd.s32 1, %s16
  $region7: #{ebm_forward.2} parent=0 // loop_footer_branch
    %15 = sbr.rel target = $region3
  $region8: #{ebm_forward.2} parent=0 // loop_exit
    _

</llo_original>
